<compile_context>
chip_gen: v6e
topology: v6e:2x2x1
jax: 0.10.0
libtpu: 0.0.40
codegen_flags: <defaults>
</compile_context>

<pallas_src>
import math
import numpy as np
import jax
import jax.numpy as jnp
from jax.experimental import pallas as pl
from jax.experimental.pallas import tpu as pltpu

WINDOW_SIZE = 11
SIGMA = 1.5
PAD = WINDOW_SIZE // 2
SSIM_WEIGHT = 2.8333
_C1 = 0.01 ** 2
_C2 = 0.03 ** 2

# bf16 conv operands: ~2-4x faster MXU matmuls + half the VMEM for conv maps.
# sigma = E[x^2] - mu^2 cancellation amplifies the bf16 rounding on very flat
# image regions; switch to jnp.float32 if exact parity with torch matters.
_CONV_DTYPE = jnp.bfloat16


def _gaussian_1d(window_size=WINDOW_SIZE, sigma=SIGMA):
    g = np.array(
        [math.exp(-((x - window_size // 2) ** 2) / float(2 * sigma ** 2))
         for x in range(window_size)], dtype=np.float64)
    return (g / g.sum()).astype(np.float32)


def _banded_gauss_matrix(n):
    """Banded (n, n) matrix B with B[a, j] = g[a - j + PAD] for |a - j| <= PAD.

    X @ B applies the 11-tap Gaussian along the last axis of X with exactly the
    zero padding of F.conv2d(..., padding=window_size // 2).  g is symmetric,
    so the same matrix serves the transposed (H) pass.
    """
    # TODO(synk): for very wide frames (W or H >~512), replace the dense band
    # with 128/256-wide lane blocks + 2*PAD halo slabs so the MXU does ~11
    # MACs per output instead of W.
    g = _gaussian_1d()
    m = np.zeros((n, n), dtype=np.float32)
    for a in range(n):
        for j in range(max(0, a - PAD), min(n, a + PAD + 1)):
            m[a, j] = g[a - j + PAD]
    return m


def _choose_block(bc, h, w, budget_bytes=16 << 20, min_steps=4):
    """Block size along the fused B*C axis.

    The ~26x/image coefficient covers the 3 inputs x 2 pipeline buffers, the
    15 conv maps (stacked / yw / z, half-width in bf16) and the elementwise
    SSIM tail.  min_steps >= 4 keeps >= 2 steps per TensorCore on v7x so the
    input double-buffer stays busy; an even step count balances the two cores.
    """
    per_img = h * w * 4
    cost = per_img * 26
    nb = max(1, min(bc, budget_bytes // max(cost, 1)))
    while nb > 1 and bc // nb < min_steps:
        nb -= 1
    while bc % nb:
        nb -= 1
    if nb > 1 and (bc // nb) % 2:
        for cand in range(nb - 1, 0, -1):
            if bc % cand == 0 and (bc // cand) % 2 == 0:
                nb = cand
                break
    return nb


def _make_loss_kernel(nb, H, W, conv_dtype):
    nbw = nb * W

    def kernel(coarse_ref, fine_ref, tgt_ref, gh_ref, gw_ref, out_ref):
        xc = coarse_ref[...].astype(jnp.float32)      # (nb*H, W)
        x1 = fine_ref[...].astype(jnp.float32)
        x2 = tgt_ref[...].astype(jnp.float32)
        gh = gh_ref[...]                              # (H, H) banded Gaussian
        gw = gw_ref[...]                              # (W, W) banded Gaussian

        # ---- MSE partial sums (coarse & fine vs target), fused with SSIM ----
        dc = xc - x2
        df = x1 - x2
        sum_coarse = jnp.sum(dc * dc)
        sum_fine = jnp.sum(df * df)

        # ---- SSIM: separable 11-tap Gaussian over the 5 stacked inputs ----
        # W (lane) pass: ONE 2-D MXU matmul, M = 5*nb*H.  The inputs are
        # already 2-D (nb*H, W), so no reshape / broadcast / per-image matmul.
        stacked = jnp.concatenate(
            [x1.astype(conv_dtype), x2.astype(conv_dtype),
             (x1 * x1).astype(conv_dtype), (x2 * x2).astype(conv_dtype),
             (x1 * x2).astype(conv_dtype)], axis=0)              # (5*nb*H, W)
        yw = jnp.dot(stacked, gw,
                     preferred_element_type=jnp.float32)         # (5*nb*H, W)

        # H (sublane) pass: move H into lanes with one per-image transpose and
        # do ONE 2-D MXU matmul, M = 5*nb*W (gh symmetric).  The SSIM tail
        # stays in the transposed (., W, H) layout — only a full sum follows.
        # TODO(synk): H or W not a multiple of 8 makes this reshape a relayout;
        # band-blocked strips (see _banded_gauss_matrix TODO) would avoid it.
        ywt = jnp.swapaxes(yw.reshape(5 * nb, H, W), 1, 2)       # (5nb, W, H)
        z = jnp.dot(ywt.reshape(5 * nbw, H).astype(conv_dtype), gh,
                    preferred_element_type=jnp.float32)          # (5*nb*W, H)

        mu1 = z[0 * nbw:1 * nbw]
        mu2 = z[1 * nbw:2 * nbw]
        s11 = z[2 * nbw:3 * nbw]
        s22 = z[3 * nbw:4 * nbw]
        s12 = z[4 * nbw:5 * nbw]

        mu1_sq = mu1 * mu1
        mu2_sq = mu2 * mu2
        mu1_mu2 = mu1 * mu2
        sigma1_sq = s11 - mu1_sq
        sigma2_sq = s22 - mu2_sq
        sigma12 = s12 - mu1_mu2

        num = (2.0 * mu1_mu2 + _C1) * (2.0 * sigma12 + _C2)
        den = (mu1_sq + mu2_sq + _C1) * (sigma1_sq + sigma2_sq + _C2)
        # approx reciprocal on the otherwise-idle EUP: ~2^-12 rel. error vs the
        # exact divide in the torch reference.
        ssim_sum = jnp.sum(num * pl.reciprocal(den, approx=True))

        # Lane-dense (1, 8, 128) partial-sum block: lanes 0/1/2 of sublane 0
        # carry [sum_coarse, sum_fine, ssim_sum]; everything else is zero.
        row = jax.lax.broadcasted_iota(jnp.int32, (8, 128), 0)
        lane = jax.lax.broadcasted_iota(jnp.int32, (8, 128), 1)
        vals = (jnp.where(lane == 0, sum_coarse, 0.0)
                + jnp.where(lane == 1, sum_fine, 0.0)
                + jnp.where(lane == 2, ssim_sum, 0.0))
        out_ref[...] = jnp.where(row == 0, vals, 0.0)[None]

    return kernel


def l2_ssim_loss(inputs, targets):
    """Pallas equivalent of L2_SSIM_Loss.forward (NCHW, values in [0, 1]).

    Like the PyTorch module, 'rgb_fine' is required (the reference raises a
    NameError otherwise because `ssim` would be undefined).
    """
    coarse = inputs['rgb_coarse']
    fine = inputs['rgb_fine']

    B, C, H, W = targets.shape
    bc = B * C
    # Lane-dense 2-D layout (B*C*H, W): free metadata reshape, no dtype up-cast
    # in the wrapper (casts happen in-kernel, halving HBM bytes for bf16/f16).
    c2 = coarse.reshape(bc * H, W)
    f2 = fine.reshape(bc * H, W)
    t2 = targets.reshape(bc * H, W)
    gh = jnp.asarray(_banded_gauss_matrix(H), dtype=_CONV_DTYPE)
    gw = jnp.asarray(_banded_gauss_matrix(W), dtype=_CONV_DTYPE)

    nb = _choose_block(bc, H, W)
    num_tiles = bc // nb
    # TODO(synk): for large frames (e.g. 3x800x800) add an H-strip grid axis
    # with a 2*PAD-row halo so per-step VMEM stays a few MiB (v7x has 64 MiB).

    in_bytes = sum(int(np.prod(a.shape)) * a.dtype.itemsize
                   for a in (c2, f2, t2))
    band_bytes = (H * H + W * W) * np.dtype(_CONV_DTYPE).itemsize
    out_bytes = num_tiles * 8 * 128 * 4
    flops = (2 * (5 * bc * H) * W * W            # W (lane) pass matmul
             + 2 * (5 * bc * W) * H * H          # H (sublane) pass matmul
             + 30 * bc * H * W)                  # elementwise MSE + SSIM tail
    cost = pl.CostEstimate(flops=int(flops),
                           transcendentals=int(bc * H * W),
                           bytes_accessed=int(in_bytes + band_bytes + out_bytes))

    partials = pl.pallas_call(
        _make_loss_kernel(nb, H, W, _CONV_DTYPE),
        out_shape=jax.ShapeDtypeStruct((num_tiles, 8, 128), jnp.float32),
        grid_spec=pltpu.PrefetchScalarGridSpec(
            num_scalar_prefetch=0,
            grid=(num_tiles,),
            in_specs=[
                pl.BlockSpec((nb * H, W), lambda i: (i, 0)),   # coarse
                pl.BlockSpec((nb * H, W), lambda i: (i, 0)),   # fine
                pl.BlockSpec((nb * H, W), lambda i: (i, 0)),   # target
                pl.BlockSpec((H, H), lambda i: (0, 0)),        # Gh (resident)
                pl.BlockSpec((W, W), lambda i: (0, 0)),        # Gw (resident)
            ],
            out_specs=pl.BlockSpec((1, 8, 128), lambda i: (i, 0, 0)),
        ),
        compiler_params=pltpu.CompilerParams(
            dimension_semantics=("parallel",),
            vmem_limit_bytes=48 << 20),   # > v5e/v6e scoped defaults, < v7x 64 MiB
        cost_estimate=cost,
    )(c2, f2, t2, gh, gw)

    sums = jnp.sum(partials, axis=(0, 1))          # (128,) partial-sum lanes
    n_el = float(bc * H * W)
    mse_coarse = sums[0] / n_el
    mse_fine = sums[1] / n_el
    mean_ssim = sums[2] / n_el

    loss = mse_coarse + mse_fine
    ssim = 1.0 - mean_ssim          # ssim_loss(img1, img2, window_size=11)
    return {'tot': loss + ssim * SSIM_WEIGHT, 'l2': loss, 'ssim': ssim}


if __name__ == "__main__":
    key = jax.random.PRNGKey(0)
    k1, k2, k3 = jax.random.split(key, 3)

    B, C, H, W = 2, 3, 16, 16  # NCHW, RGB images
    targets = jax.random.uniform(k1, (B, C, H, W), dtype=jnp.float32)
    rgb_coarse = jax.random.uniform(k2, (B, C, H, W), dtype=jnp.float32)
    rgb_fine = jax.random.uniform(k3, (B, C, H, W), dtype=jnp.float32)

    inputs = {'rgb_coarse': rgb_coarse, 'rgb_fine': rgb_fine}

    out = jax.jit(l2_ssim_loss)(inputs, targets)
    out = jax.block_until_ready(out)

    assert all(bool(jnp.isfinite(v)) for v in out.values())
    print("KERNEL_OK")
</pallas_src>

<mosaic_0001>
module attributes {stable_mosaic.version = 11 : i64} {
  func.func @kernel(%arg0: i32, %arg1: memref<16x16xf32, #tpu.memory_space<vmem>>, %arg2: memref<16x16xf32, #tpu.memory_space<vmem>>, %arg3: memref<16x16xf32, #tpu.memory_space<vmem>>, %arg4: memref<16x16xbf16, #tpu.memory_space<vmem>>, %arg5: memref<16x16xbf16, #tpu.memory_space<vmem>>, %arg6: memref<1x8x128xf32, #tpu.memory_space<vmem>>) attributes {dimension_semantics = [#tpu.dimension_semantics<parallel>], iteration_bounds = array<i64: 6>, scalar_prefetch = 0 : i64, scratch_operands = 0 : i64, tpu.core_type = #tpu.core_type<tc>, window_params = [{transform_indices = @transform_0, window_bounds = array<i64: 16, 16>}, {transform_indices = @transform_1, window_bounds = array<i64: 16, 16>}, {transform_indices = @transform_2, window_bounds = array<i64: 16, 16>}, {pipeline_mode = #tpu.pipeline_mode<synchronous>, transform_indices = @transform_3, window_bounds = array<i64: 16, 16>}, {pipeline_mode = #tpu.pipeline_mode<synchronous>, transform_indices = @transform_4, window_bounds = array<i64: 16, 16>}, {transform_indices = @transform_5, window_bounds = array<i64: 1, 8, 128>}]} {
    %c0 = arith.constant 0 : index
    %c0_0 = arith.constant 0 : index
    %0 = vector.load %arg1[%c0, %c0_0] : memref<16x16xf32, #tpu.memory_space<vmem>>, vector<16x16xf32>
    %c0_1 = arith.constant 0 : index
    %c0_2 = arith.constant 0 : index
    %1 = vector.load %arg2[%c0_1, %c0_2] : memref<16x16xf32, #tpu.memory_space<vmem>>, vector<16x16xf32>
    %c0_3 = arith.constant 0 : index
    %c0_4 = arith.constant 0 : index
    %2 = vector.load %arg3[%c0_3, %c0_4] : memref<16x16xf32, #tpu.memory_space<vmem>>, vector<16x16xf32>
    %c0_5 = arith.constant 0 : index
    %c0_6 = arith.constant 0 : index
    %3 = vector.load %arg4[%c0_5, %c0_6] : memref<16x16xbf16, #tpu.memory_space<vmem>>, vector<16x16xbf16>
    %c0_7 = arith.constant 0 : index
    %c0_8 = arith.constant 0 : index
    %4 = vector.load %arg5[%c0_7, %c0_8] : memref<16x16xbf16, #tpu.memory_space<vmem>>, vector<16x16xbf16>
    %5 = arith.subf %0, %2 : vector<16x16xf32>
    %6 = arith.subf %1, %2 : vector<16x16xf32>
    %7 = arith.mulf %5, %5 : vector<16x16xf32>
    %8 = vector.shape_cast %7 : vector<16x16xf32> to vector<1x16x16xf32>
    %cst = arith.constant dense<0.000000e+00> : vector<1xf32>
    %9 = vector.multi_reduction <add>, %8, %cst [1, 2] : vector<1x16x16xf32> to vector<1xf32>
    %10 = vector.shape_cast %9 : vector<1xf32> to vector<1x1x1xf32>
    %11 = vector.extract %10[0, 0, 0] : f32 from vector<1x1x1xf32>
    %12 = arith.mulf %6, %6 : vector<16x16xf32>
    %13 = vector.shape_cast %12 : vector<16x16xf32> to vector<1x16x16xf32>
    %cst_9 = arith.constant dense<0.000000e+00> : vector<1xf32>
    %14 = vector.multi_reduction <add>, %13, %cst_9 [1, 2] : vector<1x16x16xf32> to vector<1xf32>
    %15 = vector.shape_cast %14 : vector<1xf32> to vector<1x1x1xf32>
    %16 = vector.extract %15[0, 0, 0] : f32 from vector<1x1x1xf32>
    %17 = arith.truncf %1 : vector<16x16xf32> to vector<16x16xbf16>
    %18 = arith.truncf %2 : vector<16x16xf32> to vector<16x16xbf16>
    %19 = arith.mulf %1, %1 : vector<16x16xf32>
    %20 = arith.truncf %19 : vector<16x16xf32> to vector<16x16xbf16>
    %21 = arith.mulf %2, %2 : vector<16x16xf32>
    %22 = arith.truncf %21 : vector<16x16xf32> to vector<16x16xbf16>
    %23 = arith.mulf %1, %2 : vector<16x16xf32>
    %24 = arith.truncf %23 : vector<16x16xf32> to vector<16x16xbf16>
    %25 = tpu.concatenate %17, %18, %20, %22, %24 in 0 : vector<16x16xbf16>, vector<16x16xbf16>, vector<16x16xbf16>, vector<16x16xbf16>, vector<16x16xbf16> -> vector<80x16xbf16>
    %cst_10 = arith.constant dense<0.000000e+00> : vector<80x16xf32>
    %26 = tpu.matmul %25, %4, %cst_10 {dimension_numbers = #tpu.dot_dimension_numbers<[1], [0], [0], [1], [0, 0, 1, 1], [], []>} : vector<80x16xbf16>, vector<16x16xbf16>, vector<80x16xf32> -> vector<80x16xf32>
    %27 = vector.shape_cast %26 : vector<80x16xf32> to vector<5x16x16xf32>
    %28 = tpu.transpose %27, [0, 2, 1] : vector<5x16x16xf32> -> vector<5x16x16xf32>
    %29 = vector.shape_cast %28 : vector<5x16x16xf32> to vector<80x16xf32>
    %30 = arith.truncf %29 : vector<80x16xf32> to vector<80x16xbf16>
    %cst_11 = arith.constant dense<0.000000e+00> : vector<80x16xf32>
    %31 = tpu.matmul %30, %3, %cst_11 {dimension_numbers = #tpu.dot_dimension_numbers<[1], [0], [0], [1], [0, 0, 1, 1], [], []>} : vector<80x16xbf16>, vector<16x16xbf16>, vector<80x16xf32> -> vector<80x16xf32>
    %32 = vector.extract_strided_slice %31 {offsets = [0, 0], sizes = [16, 16], strides = [1, 1]} : vector<80x16xf32> to vector<16x16xf32>
    %33 = vector.extract_strided_slice %31 {offsets = [16, 0], sizes = [16, 16], strides = [1, 1]} : vector<80x16xf32> to vector<16x16xf32>
    %34 = vector.extract_strided_slice %31 {offsets = [32, 0], sizes = [16, 16], strides = [1, 1]} : vector<80x16xf32> to vector<16x16xf32>
    %35 = vector.extract_strided_slice %31 {offsets = [48, 0], sizes = [16, 16], strides = [1, 1]} : vector<80x16xf32> to vector<16x16xf32>
    %36 = vector.extract_strided_slice %31 {offsets = [64, 0], sizes = [16, 16], strides = [1, 1]} : vector<80x16xf32> to vector<16x16xf32>
    %37 = arith.mulf %32, %32 : vector<16x16xf32>
    %38 = arith.mulf %33, %33 : vector<16x16xf32>
    %39 = arith.mulf %32, %33 : vector<16x16xf32>
    %40 = arith.subf %34, %37 : vector<16x16xf32>
    %41 = arith.subf %35, %38 : vector<16x16xf32>
    %42 = arith.subf %36, %39 : vector<16x16xf32>
    %cst_12 = arith.constant 2.000000e+00 : f32
    %43 = vector.broadcast %cst_12 : f32 to vector<16x16xf32>
    %44 = arith.mulf %43, %39 : vector<16x16xf32>
    %cst_13 = arith.constant 9.99999974E-5 : f32
    %45 = vector.broadcast %cst_13 : f32 to vector<16x16xf32>
    %46 = arith.addf %44, %45 : vector<16x16xf32>
    %cst_14 = arith.constant 2.000000e+00 : f32
    %47 = vector.broadcast %cst_14 : f32 to vector<16x16xf32>
    %48 = arith.mulf %47, %42 : vector<16x16xf32>
    %cst_15 = arith.constant 8.99999984E-4 : f32
    %49 = vector.broadcast %cst_15 : f32 to vector<16x16xf32>
    %50 = arith.addf %48, %49 : vector<16x16xf32>
    %51 = arith.mulf %46, %50 : vector<16x16xf32>
    %52 = arith.addf %37, %38 : vector<16x16xf32>
    %cst_16 = arith.constant 9.99999974E-5 : f32
    %53 = vector.broadcast %cst_16 : f32 to vector<16x16xf32>
    %54 = arith.addf %52, %53 : vector<16x16xf32>
    %55 = arith.addf %40, %41 : vector<16x16xf32>
    %cst_17 = arith.constant 8.99999984E-4 : f32
    %56 = vector.broadcast %cst_17 : f32 to vector<16x16xf32>
    %57 = arith.addf %55, %56 : vector<16x16xf32>
    %58 = arith.mulf %54, %57 : vector<16x16xf32>
    %59 = tpu.reciprocal %58 {approx = true} : vector<16x16xf32> -> vector<16x16xf32>
    %60 = arith.mulf %51, %59 : vector<16x16xf32>
    %61 = vector.shape_cast %60 : vector<16x16xf32> to vector<1x16x16xf32>
    %cst_18 = arith.constant dense<0.000000e+00> : vector<1xf32>
    %62 = vector.multi_reduction <add>, %61, %cst_18 [1, 2] : vector<1x16x16xf32> to vector<1xf32>
    %63 = vector.shape_cast %62 : vector<1xf32> to vector<1x1x1xf32>
    %64 = vector.extract %63[0, 0, 0] : f32 from vector<1x1x1xf32>
    %65 = tpu.iota {dimensions = array<i32: 0>} : vector<8x128xi32>
    %66 = tpu.iota {dimensions = array<i32: 1>} : vector<8x128xi32>
    %c0_i32 = arith.constant 0 : i32
    %67 = vector.broadcast %c0_i32 : i32 to vector<8x128xi32>
    %68 = arith.cmpi eq, %66, %67 : vector<8x128xi32>
    %cst_19 = arith.constant 0.000000e+00 : f32
    %69 = vector.broadcast %11 : f32 to vector<8x128xf32>
    %70 = vector.broadcast %cst_19 : f32 to vector<8x128xf32>
    %71 = arith.select %68, %69, %70 : vector<8x128xi1>, vector<8x128xf32>
    %c1_i32 = arith.constant 1 : i32
    %72 = vector.broadcast %c1_i32 : i32 to vector<8x128xi32>
    %73 = arith.cmpi eq, %66, %72 : vector<8x128xi32>
    %cst_20 = arith.constant 0.000000e+00 : f32
    %74 = vector.broadcast %16 : f32 to vector<8x128xf32>
    %75 = vector.broadcast %cst_20 : f32 to vector<8x128xf32>
    %76 = arith.select %73, %74, %75 : vector<8x128xi1>, vector<8x128xf32>
    %77 = arith.addf %71, %76 : vector<8x128xf32>
    %c2_i32 = arith.constant 2 : i32
    %78 = vector.broadcast %c2_i32 : i32 to vector<8x128xi32>
    %79 = arith.cmpi eq, %66, %78 : vector<8x128xi32>
    %cst_21 = arith.constant 0.000000e+00 : f32
    %80 = vector.broadcast %64 : f32 to vector<8x128xf32>
    %81 = vector.broadcast %cst_21 : f32 to vector<8x128xf32>
    %82 = arith.select %79, %80, %81 : vector<8x128xi1>, vector<8x128xf32>
    %83 = arith.addf %77, %82 : vector<8x128xf32>
    %c0_i32_22 = arith.constant 0 : i32
    %84 = vector.broadcast %c0_i32_22 : i32 to vector<8x128xi32>
    %85 = arith.cmpi eq, %65, %84 : vector<8x128xi32>
    %cst_23 = arith.constant 0.000000e+00 : f32
    %86 = vector.broadcast %cst_23 : f32 to vector<8x128xf32>
    %87 = arith.select %85, %83, %86 : vector<8x128xi1>, vector<8x128xf32>
    %88 = vector.shape_cast %87 : vector<8x128xf32> to vector<1x8x128xf32>
    %c0_24 = arith.constant 0 : index
    %c0_25 = arith.constant 0 : index
    %c0_26 = arith.constant 0 : index
    %89 = vector.load %arg6[%c0_24, %c0_25, %c0_26] : memref<1x8x128xf32, #tpu.memory_space<vmem>>, vector<1x8x128xf32>
    tpu.vector_store %arg6[%c0_24, %c0_25, %c0_26], %88 {strides = array<i32>} : memref<1x8x128xf32, #tpu.memory_space<vmem>>, vector<1x8x128xf32>,
    return
  }
  func.func @transform_0(%arg0: i32) -> (i32, i32) {
    %c0_i32 = arith.constant 0 : i32
    %c0_i32_0 = arith.constant 0 : i32
    return %arg0, %c0_i32 : i32, i32
  }
  func.func @transform_1(%arg0: i32) -> (i32, i32) {
    %c0_i32 = arith.constant 0 : i32
    %c0_i32_0 = arith.constant 0 : i32
    return %arg0, %c0_i32 : i32, i32
  }
  func.func @transform_2(%arg0: i32) -> (i32, i32) {
    %c0_i32 = arith.constant 0 : i32
    %c0_i32_0 = arith.constant 0 : i32
    return %arg0, %c0_i32 : i32, i32
  }
  func.func @transform_3(%arg0: i32) -> (i32, i32) {
    %c0_i32 = arith.constant 0 : i32
    %c0_i32_0 = arith.constant 0 : i32
    %c0_i32_1 = arith.constant 0 : i32
    return %c0_i32, %c0_i32_0 : i32, i32
  }
  func.func @transform_4(%arg0: i32) -> (i32, i32) {
    %c0_i32 = arith.constant 0 : i32
    %c0_i32_0 = arith.constant 0 : i32
    %c0_i32_1 = arith.constant 0 : i32
    return %c0_i32, %c0_i32_0 : i32, i32
  }
  func.func @transform_5(%arg0: i32) -> (i32, i32, i32) {
    %c0_i32 = arith.constant 0 : i32
    %c0_i32_0 = arith.constant 0 : i32
    %c0_i32_1 = arith.constant 0 : i32
    return %arg0, %c0_i32, %c0_i32_0 : i32, i32, i32
  }
}

</mosaic_0001>

<llo_original>
// kernel: l2_ssim_loss.1
$region0: #{l2_ssim_loss.1}
  #allocation0 [shape = 'u32[]', space=smem, size = 0x4, offset = 0x4, fixed_abs, tag = 'smem constant byte address 0x4 - core index']
  #allocation1 [shape = 'u32[144,128]{1,0:T(1,128)}', space=vmem, size = 0x12000, scoped, tag = 'internal scratch']
  %s0 = inlined_call_operand.hbm [shape: f32[96,16], index: 0, kind: input, shape index: {}]
  %s1 = inlined_call_operand.hbm [shape: f32[96,16], index: 1, kind: input, shape index: {}]
  %s2 = inlined_call_operand.hbm [shape: f32[96,16], index: 2, kind: input, shape index: {}]
  %s3 = inlined_call_operand.vmem [shape: bf16[16,16], index: 3, kind: input, shape index: {}, may-alias: {3,4}]
  %s4 = inlined_call_operand.vmem [shape: bf16[16,16], index: 4, kind: input, shape index: {}, may-alias: {3,4}]
  %s5 = inlined_call_operand.vmem [shape: f32[6,8,128], index: 5, kind: output, shape index: {}]
  %s6 = sld [smem:[#allocation0]]
  $region65: #{l2_ssim_loss.1} parent=0
    _
  %s8 = ssub.s32 1, %s6
  %s9 = scalar_select 0, %s8, %s6
  $region1: #{l2_ssim_loss.1} parent=0
    #allocation2 [shape = 'u8[16384]{0}', space=vmem, size = 0x4000, scoped, tag = 'input window, operand 0']
    #allocation3 [shape = 's32[2]{0}', space=sflag, size = 0x8, scoped, tag = 'scoped memory for l2_ssim_loss.1']
    #allocation4 [shape = 'u8[16384]{0}', space=vmem, size = 0x4000, scoped, tag = 'input window, operand 1']
    #allocation5 [shape = 's32[2]{0}', space=sflag, size = 0x8, scoped, tag = 'scoped memory for l2_ssim_loss.1']
    #allocation6 [shape = 'u8[16384]{0}', space=vmem, size = 0x4000, scoped, tag = 'input window, operand 2']
    %10 = vsyncpa [#allocation3], 0
    %s11 = scalar_lea.sflag [#allocation3], 1
    %12 = vsyncpa %s11, 0
    %13 = vsyncpa [#allocation5], 0
    %s14 = scalar_lea.sflag [#allocation5], 1
    %15 = vsyncpa %s14, 0
    loop: start=0, step=1, limit=8
    $region2: #{l2_ssim_loss.1} parent=1 // loop_pre_header
      _
    $region3: #{l2_ssim_loss.1} parent=1 // loop_header
      %s17 = sphi 0, %s21
      %p18 = scmp.ge.s32.totalorder %s17, 8
      %s27 = sphi 0, %s29
      %s30 = sphi 0, %s27
      %s31 = sphi 0, %s30
      %s47 = sphi 0, %s31
      %s53 = sphi 0, %s55
      %s56 = sphi 0, %s53
      %s57 = sphi 0, %s56
      %s73 = sphi 0, %s57
      %s79 = sphi 0, %s81
      %s82 = sphi 0, %s79
      %s83 = sphi 0, %s82
      %s99 = sphi 0, %s83
      %s103 = sphi 0, %s103
      %s105 = sphi 0, %s103
      %s106 = sphi 0, %s105
      %s120 = sphi 0, %s106
      %s124 = sphi 0, %s124
      %s126 = sphi 0, %s124
      %s127 = sphi 0, %s126
      %s141 = sphi 0, %s127
      %s147 = sphi 0, %s149
      %s150 = sphi 0, %s147
      %s151 = sphi 0, %s150
      %s167 = sphi 0, %s151
    $region4: #{l2_ssim_loss.1} parent=1 // loop_header_branch
      %20 = sbr.rel (%p18) target = $region8
    $region5: #{l2_ssim_loss.1} parent=1 // loop_body
      %s22 = ssub.s32 %s17, 1
      %s23 = ssub.s32 %s17, 2
      %s24 = sadd.s32 %s17, 1
      %s25 = ssub.s32 %s17, %s24
      %p26 = scmp.eq.s32.totalorder %s25, 0
      %s28 = sadd.s32 %s27, 1
      %s29 = scalar_select %p26, %s27, %s28
      %p32 = pneg %p26
      %p33 = scmp.eq.s32.totalorder %s17, 5
      %p34 = por %p32, %p33
      %p35 = scmp.ne.s32.totalorder %s27, %s30
      %p36 = scmp.eq.s32.totalorder %s17, 0
      %p37 = por %p35, %p36
      %p38 = scmp.ne.s32.totalorder %s27, %s30
      %p39 = scmp.eq.s32.totalorder %s22, 5
      %p40 = por %p38, %p39
      %p41 = scmp.ne.s32.totalorder %s30, %s31
      %p42 = scmp.eq.s32.totalorder %s22, 0
      %p43 = por %p41, %p42
      %p44 = scmp.ne.s32.totalorder %s30, %s31
      %p45 = scmp.eq.s32.totalorder %s23, 5
      %p46 = por %p44, %p45
      %p48 = scmp.ne.s32.totalorder %s31, %s47
      %p49 = scmp.eq.s32.totalorder %s23, 0
      %p50 = por %p48, %p49
      %s51 = ssub.s32 %s17, %s24
      %p52 = scmp.eq.s32.totalorder %s51, 0
      %s54 = sadd.s32 %s53, 1
      %s55 = scalar_select %p52, %s53, %s54
      %p58 = pneg %p52
      %p59 = scmp.eq.s32.totalorder %s17, 5
      %p60 = por %p58, %p59
      %p61 = scmp.ne.s32.totalorder %s53, %s56
      %p62 = scmp.eq.s32.totalorder %s17, 0
      %p63 = por %p61, %p62
      %p64 = scmp.ne.s32.totalorder %s53, %s56
      %p65 = scmp.eq.s32.totalorder %s22, 5
      %p66 = por %p64, %p65
      %p67 = scmp.ne.s32.totalorder %s56, %s57
      %p68 = scmp.eq.s32.totalorder %s22, 0
      %p69 = por %p67, %p68
      %p70 = scmp.ne.s32.totalorder %s56, %s57
      %p71 = scmp.eq.s32.totalorder %s23, 5
      %p72 = por %p70, %p71
      %p74 = scmp.ne.s32.totalorder %s57, %s73
      %p75 = scmp.eq.s32.totalorder %s23, 0
      %p76 = por %p74, %p75
      %s77 = ssub.s32 %s17, %s24
      %p78 = scmp.eq.s32.totalorder %s77, 0
      %s80 = sadd.s32 %s79, 1
      %s81 = scalar_select %p78, %s79, %s80
      %p84 = pneg %p78
      %p85 = scmp.eq.s32.totalorder %s17, 5
      %p86 = por %p84, %p85
      %p87 = scmp.ne.s32.totalorder %s79, %s82
      %p88 = scmp.eq.s32.totalorder %s17, 0
      %p89 = por %p87, %p88
      %p90 = scmp.ne.s32.totalorder %s79, %s82
      %p91 = scmp.eq.s32.totalorder %s22, 5
      %p92 = por %p90, %p91
      %p93 = scmp.ne.s32.totalorder %s82, %s83
      %p94 = scmp.eq.s32.totalorder %s22, 0
      %p95 = por %p93, %p94
      %p96 = scmp.ne.s32.totalorder %s82, %s83
      %p97 = scmp.eq.s32.totalorder %s23, 5
      %p98 = por %p96, %p97
      %p100 = scmp.ne.s32.totalorder %s83, %s99
      %p101 = scmp.eq.s32.totalorder %s23, 0
      %p102 = por %p100, %p101
      %s104 = sadd.s32 %s103, 1
      %p107 = scmp.eq.s32.totalorder %s17, 5
      %p108 = scmp.ne.s32.totalorder %s103, %s105
      %p109 = scmp.eq.s32.totalorder %s17, 0
      %p110 = por %p108, %p109
      %p111 = scmp.ne.s32.totalorder %s103, %s105
      %p112 = scmp.eq.s32.totalorder %s22, 5
      %p113 = por %p111, %p112
      %p114 = scmp.ne.s32.totalorder %s105, %s106
      %p115 = scmp.eq.s32.totalorder %s22, 0
      %p116 = por %p114, %p115
      %p117 = scmp.ne.s32.totalorder %s105, %s106
      %p118 = scmp.eq.s32.totalorder %s23, 5
      %p119 = por %p117, %p118
      %p121 = scmp.ne.s32.totalorder %s106, %s120
      %p122 = scmp.eq.s32.totalorder %s23, 0
      %p123 = por %p121, %p122
      %s125 = sadd.s32 %s124, 1
      %p128 = scmp.eq.s32.totalorder %s17, 5
      %p129 = scmp.ne.s32.totalorder %s124, %s126
      %p130 = scmp.eq.s32.totalorder %s17, 0
      %p131 = por %p129, %p130
      %p132 = scmp.ne.s32.totalorder %s124, %s126
      %p133 = scmp.eq.s32.totalorder %s22, 5
      %p134 = por %p132, %p133
      %p135 = scmp.ne.s32.totalorder %s126, %s127
      %p136 = scmp.eq.s32.totalorder %s22, 0
      %p137 = por %p135, %p136
      %p138 = scmp.ne.s32.totalorder %s126, %s127
      %p139 = scmp.eq.s32.totalorder %s23, 5
      %p140 = por %p138, %p139
      %p142 = scmp.ne.s32.totalorder %s127, %s141
      %p143 = scmp.eq.s32.totalorder %s23, 0
      %p144 = por %p142, %p143
      %s145 = ssub.s32 %s17, %s24
      %p146 = scmp.eq.s32.totalorder %s145, 0
      %s148 = sadd.s32 %s147, 1
      %s149 = scalar_select %p146, %s147, %s148
      %p152 = pneg %p146
      %p153 = scmp.eq.s32.totalorder %s17, 5
      %p154 = por %p152, %p153
      %p155 = scmp.ne.s32.totalorder %s147, %s150
      %p156 = scmp.eq.s32.totalorder %s17, 0
      %p157 = por %p155, %p156
      %p158 = scmp.ne.s32.totalorder %s147, %s150
      %p159 = scmp.eq.s32.totalorder %s22, 5
      %p160 = por %p158, %p159
      %p161 = scmp.ne.s32.totalorder %s150, %s151
      %p162 = scmp.eq.s32.totalorder %s22, 0
      %p163 = por %p161, %p162
      %p164 = scmp.ne.s32.totalorder %s150, %s151
      %p165 = scmp.eq.s32.totalorder %s23, 5
      %p166 = por %p164, %p165
      %p168 = scmp.ne.s32.totalorder %s151, %s167
      %p169 = scmp.eq.s32.totalorder %s23, 0
      %p170 = por %p168, %p169
      %p171 = scmp.le.s32.totalorder 1, %s17
      %p172 = scmp.lt.s32.totalorder %s17, 7
      %p173 = pnand %p171, %p172
      %p174 = pneg %p173
      // Predicated region
      $region9: #{l2_ssim_loss.1} parent=5 // pred_check
        _
      $region10: #{l2_ssim_loss.1} parent=5 // pred_check_branch
        %176 = sbr.rel (%p173) target = $region12
      $region11: #{l2_ssim_loss.1} parent=5 // pred_region
        %s177 = ssub.s32 %s17, 1
        // Predicated region
        $region13: #{l2_ssim_loss.1} parent=11 // pred_check
          %p178 = pneg %p116
        $region14: #{l2_ssim_loss.1} parent=11 // pred_check_branch
          %180 = sbr.rel (%p178) target = $region16
        $region15: #{l2_ssim_loss.1} parent=11 // pred_region
          _
        $region16: #{l2_ssim_loss.1} parent=11 // pred_fallthru
          _
        // Predicated region
        $region17: #{l2_ssim_loss.1} parent=11 // pred_check
          %p181 = pneg %p137
        $region18: #{l2_ssim_loss.1} parent=11 // pred_check_branch
          %183 = sbr.rel (%p181) target = $region20
        $region19: #{l2_ssim_loss.1} parent=11 // pred_region
          _
        $region20: #{l2_ssim_loss.1} parent=11 // pred_fallthru
          _
      $region12: #{l2_ssim_loss.1} parent=5 // pred_fallthru
        _
      %p184 = scmp.lt.s32.totalorder %s17, 6
      // Predicated region
      $region21: #{l2_ssim_loss.1} parent=5 // pred_check
        %p185 = pneg %p184
      $region22: #{l2_ssim_loss.1} parent=5 // pred_check_branch
        %187 = sbr.rel (%p185) target = $region24
      $region23: #{l2_ssim_loss.1} parent=5 // pred_region
        // Predicated region
        $region25: #{l2_ssim_loss.1} parent=23 // pred_check
          %p188 = pneg %p37
        $region26: #{l2_ssim_loss.1} parent=23 // pred_check_branch
          %190 = sbr.rel (%p188) target = $region28
        $region27: #{l2_ssim_loss.1} parent=23 // pred_region
          %s191 = sand.u32 %s27, 1
          %s192 = scalar_lea.sflag [#allocation3], %s191
          %s193 = sand.u32 %s27, 1
          %s194 = smul.addr %s193, 16
          %s195 = scalar_lea.vmem [#allocation2], %s194
          %s196 = smul.u32 2, %s17
          %s198 = ssub.s32 256, 256
          %199 = vsyncadd %s192, %s198
          %s200 = smul.addr %s196, 128
          %s201 = scalar_lea.hbm %s0, %s200
          %s202 = sshll.u32 %s195, 4
          %s203 = int_to_ptr.vmem [resolvable:$true] %s202
          %208 = dma.hbm_to_vmem [thread:$0]  %s201, 256, %s203, %s192, 128, 128, 8
        $region28: #{l2_ssim_loss.1} parent=23 // pred_fallthru
          _
        // Predicated region
        $region29: #{l2_ssim_loss.1} parent=23 // pred_check
          %p209 = pneg %p63
        $region30: #{l2_ssim_loss.1} parent=23 // pred_check_branch
          %211 = sbr.rel (%p209) target = $region32
        $region31: #{l2_ssim_loss.1} parent=23 // pred_region
          %s212 = sand.u32 %s17, 1
          %s213 = scalar_lea.sflag [#allocation5], %s212
          %s214 = sand.u32 %s53, 1
          %s215 = smul.addr %s214, 16
          %s216 = scalar_lea.vmem [#allocation4], %s215
          %s217 = smul.u32 2, %s17
          %s219 = ssub.s32 256, 256
          %220 = vsyncadd %s213, %s219
          %s221 = smul.addr %s217, 128
          %s222 = scalar_lea.hbm %s1, %s221
          %s223 = sshll.u32 %s216, 4
          %s224 = int_to_ptr.vmem [resolvable:$true] %s223
          %229 = dma.hbm_to_vmem [thread:$0]  %s222, 256, %s224, %s213, 128, 128, 8
        $region32: #{l2_ssim_loss.1} parent=23 // pred_fallthru
          _
        // Predicated region
        $region33: #{l2_ssim_loss.1} parent=23 // pred_check
          %p230 = pneg %p89
        $region34: #{l2_ssim_loss.1} parent=23 // pred_check_branch
          %232 = sbr.rel (%p230) target = $region36
        $region35: #{l2_ssim_loss.1} parent=23 // pred_region
          %s233 = sand.u32 %s17, 1
          %s234 = scalar_lea.sflag [#allocation5], %s233
          %s235 = sand.u32 %s79, 1
          %s236 = smul.addr %s235, 16
          %s237 = scalar_lea.vmem [#allocation6], %s236
          %s238 = smul.u32 2, %s17
          %s240 = ssub.s32 256, 256
          %241 = vsyncadd %s234, %s240
          %s242 = smul.addr %s238, 128
          %s243 = scalar_lea.hbm %s2, %s242
          %s244 = sshll.u32 %s237, 4
          %s245 = int_to_ptr.vmem [resolvable:$true] %s244
          %250 = dma.hbm_to_vmem [thread:$0]  %s243, 256, %s245, %s234, 128, 128, 8
        $region36: #{l2_ssim_loss.1} parent=23 // pred_fallthru
          _
      $region24: #{l2_ssim_loss.1} parent=5 // pred_fallthru
        _
      %p251 = scmp.le.s32.totalorder 1, %s17
      %p252 = scmp.lt.s32.totalorder %s17, 7
      %p253 = pnand %p251, %p252
      %p254 = pneg %p253
      // Predicated region
      $region37: #{l2_ssim_loss.1} parent=5 // pred_check
        _
      $region38: #{l2_ssim_loss.1} parent=5 // pred_check_branch
        %256 = sbr.rel (%p253) target = $region40
      $region39: #{l2_ssim_loss.1} parent=5 // pred_region
        %s257 = ssub.s32 %s17, 1
        %s258 = sand.u32 %s30, 1
        %s259 = scalar_lea.sflag [#allocation3], %s258
        %s260 = sand.u32 %s30, 1
        %s261 = smul.addr %s260, 16
        %s262 = scalar_lea.vmem [#allocation2], %s261
        // Predicated region
        $region41: #{l2_ssim_loss.1} parent=39 // pred_check
          %p263 = pneg %p43
        $region42: #{l2_ssim_loss.1} parent=39 // pred_check_branch
          %265 = sbr.rel (%p263) target = $region44
        $region43: #{l2_ssim_loss.1} parent=39 // pred_region
          %266 = dma.done %s259, 256
        $region44: #{l2_ssim_loss.1} parent=39 // pred_fallthru
          _
        %s267 = sand.u32 %s22, 1
        %s268 = scalar_lea.sflag [#allocation5], %s267
        %s269 = sand.u32 %s56, 1
        %s270 = smul.addr %s269, 16
        %s271 = scalar_lea.vmem [#allocation4], %s270
        // Predicated region
        $region45: #{l2_ssim_loss.1} parent=39 // pred_check
          %p272 = pneg %p69
        $region46: #{l2_ssim_loss.1} parent=39 // pred_check_branch
          %274 = sbr.rel (%p272) target = $region48
        $region47: #{l2_ssim_loss.1} parent=39 // pred_region
          %275 = dma.done %s268, 256
        $region48: #{l2_ssim_loss.1} parent=39 // pred_fallthru
          _
        %s276 = sand.u32 %s22, 1
        %s277 = scalar_lea.sflag [#allocation5], %s276
        %s278 = sand.u32 %s82, 1
        %s279 = smul.addr %s278, 16
        %s280 = scalar_lea.vmem [#allocation6], %s279
        // Predicated region
        $region49: #{l2_ssim_loss.1} parent=39 // pred_check
          %p281 = pneg %p95
        $region50: #{l2_ssim_loss.1} parent=39 // pred_check_branch
          %283 = sbr.rel (%p281) target = $region52
        $region51: #{l2_ssim_loss.1} parent=39 // pred_region
          %284 = dma.done %s277, 256
        $region52: #{l2_ssim_loss.1} parent=39 // pred_fallthru
          _
        %s285 = sand.u32 %s30, 1
        %s286 = scalar_lea.sflag [#allocation3], %s285
        %s287 = sand.u32 %s30, 1
        %s288 = smul.addr %s287, 16
        %s289 = scalar_lea.vmem [#allocation2], %s288
        %p290 = pneg %p43
        %p291 = pneg %p40
        %s292 = sand.u32 %s22, 1
        %s293 = scalar_lea.sflag [#allocation5], %s292
        %s294 = sand.u32 %s56, 1
        %s295 = smul.addr %s294, 16
        %s296 = scalar_lea.vmem [#allocation4], %s295
        %p297 = pneg %p69
        %p298 = pneg %p66
        %s299 = sand.u32 %s22, 1
        %s300 = scalar_lea.sflag [#allocation5], %s299
        %s301 = sand.u32 %s82, 1
        %s302 = smul.addr %s301, 16
        %s303 = scalar_lea.vmem [#allocation6], %s302
        %p304 = pneg %p95
        %p305 = pneg %p92
        %p306 = pneg %p116
        %p307 = pneg %p113
        %p308 = pneg %p137
        %p309 = pneg %p134
        %p310 = pneg %p163
        %p311 = pneg %p160
        %p312 = scmp.lt.s32.totalorder %s22, 5
        %s313 = scalar_select %p312, %s22, 5
        %s314 = smul.addr %s313, 8
        %s315 = scalar_lea.vmem %s5, %s314
        %s316 = smul.u32 2, %s22
        %s317 = smul.u32 2, %s22
        %s318 = smul.u32 2, %s22
        %p319 = scmp.lt.s32.totalorder %s22, 5
        %s320 = scalar_select %p319, %s22, 5
        %s321 = smul.addr %s320, 8
        %s322 = scalar_lea.vmem %s5, %s321
        %v324 = vld [vmem:[%s262] sm:$0xff]
        %v325 = vld [vmem:[%s262 + $0x8] sm:$0xff]
        %v326 = vld [vmem:[%s271] sm:$0xff]
        %v327 = vld [vmem:[%s271 + $0x8] sm:$0xff]
        %v328 = vld [vmem:[%s280] sm:$0xff]
        %v329 = vld [vmem:[%s280 + $0x8] sm:$0xff]
        %v330 = vld [vmem:[%s3] sm:$0xf]
        %v331 = vld [vmem:[%s3 + $0x4] sm:$0xf]
        %v332 = vld [vmem:[%s4] sm:$0xf]
        %v333 = vld [vmem:[%s4 + $0x4] sm:$0xf]
        %v334 = vsub.f32 %v324, %v328
        %v335 = vsub.f32 %v325, %v329
        %v336 = vsub.f32 %v326, %v328
        %v337 = vsub.f32 %v327, %v329
        %v338 = vmul.f32 %v334, %v334
        %v339 = vmul.f32 %v335, %v335
        %vm340 = vcmask 130048
        %v341 = vsel %vm340, %v338, 0.0
        %v342 = vsel %vm340, %v339, 0.0
        %v343 = vadd.f32 %v341, %v342
        %344 = vadd.xlane.f32.xlu0 %v343
        %v345 = vpop.xlane.xlu0 %344
        %v346 = vrot.slane %v345, 4
        %v347 = vadd.f32 %v345, %v346
        %v348 = vrot.slane %v347, 2
        %v349 = vadd.f32 %v347, %v348
        %v350 = vrot.slane %v349, 1
        %v351 = vadd.f32 %v349, %v350
        %s352 = vtos %v351
        %v353 = vmul.f32 %v336, %v336
        %v354 = vmul.f32 %v337, %v337
        %v355 = vsel %vm340, %v353, 0.0
        %v356 = vsel %vm340, %v354, 0.0
        %v357 = vadd.f32 %v355, %v356
        %358 = vadd.xlane.f32.xlu0 %v357
        %v359 = vpop.xlane.xlu0 %358
        %v360 = vrot.slane %v359, 4
        %v361 = vadd.f32 %v359, %v360
        %v362 = vrot.slane %v361, 2
        %v363 = vadd.f32 %v361, %v362
        %v364 = vrot.slane %v363, 1
        %v365 = vadd.f32 %v363, %v364
        %s366 = vtos %v365
        %v367 = vpack.c.bf16 %v327, %v326
        %v368 = vpack.c.bf16 %v329, %v328
        %v369 = vmul.f32 %v326, %v326
        %v370 = vmul.f32 %v327, %v327
        %v371 = vpack.c.bf16 %v370, %v369
        %v372 = vmul.f32 %v328, %v328
        %v373 = vmul.f32 %v329, %v329
        %v374 = vpack.c.bf16 %v373, %v372
        %v375 = vmul.f32 %v326, %v328
        %v376 = vmul.f32 %v327, %v329
        %v377 = vpack.c.bf16 %v376, %v375
        %v380 = vunpack.c.l.b16 %v332
        %v381 = vunpack.c.l.b16 %v333
        %v382 = vpack.c.b16 %v381, %v380
        %v385 = vsel %vm340, %v367, 0
        %v388 = vsel %vm340, %v368, 0
        %v391 = vsel %vm340, %v371, 0
        %v394 = vsel %vm340, %v374, 0
        %v397 = vsel %vm340, %v377, 0
        %399 = vmatprep.subr.bf16.mxu0 0
        %400 = vmatpush1.bf16.msra.mxu0 0
        %401 = vmatprep.subr.bf16.mxu0 0
        %402 = vmatpush1.bf16.msra.mxu0 0
        %403 = vmatprep.subr.bf16.mxu0 0
        %404 = vmatpush1.bf16.msra.mxu0 0
        %405 = vmatprep.subr.bf16.mxu0 0
        %406 = vmatpush1.bf16.msra.mxu0 0
        %407 = vmatprep.subr.bf16.mxu0 0
        %408 = vmatpush1.bf16.msra.mxu0 0
        %409 = vmatprep.subr.bf16.mxu0 0
        %410 = vmatpush1.bf16.msra.mxu0 0
        %411 = vmatprep.subr.bf16.mxu0 0
        %412 = vmatpush1.bf16.msra.mxu0 0
        %413 = vmatprep.subr.bf16.mxu0 0
        %414 = vmatpush1.bf16.msra.mxu0 %v382
        %415 = vmatprep.subr.bf16.mxu0 0
        %416 = vmatpush2.bf16.msra.mxu0 0
        %417 = vmatprep.subr.bf16.mxu0 0
        %418 = vmatpush2.bf16.msra.mxu0 0
        %419 = vmatprep.subr.bf16.mxu0 0
        %420 = vmatpush2.bf16.msra.mxu0 0
        %421 = vmatprep.subr.bf16.mxu0 0
        %422 = vmatpush2.bf16.msra.mxu0 0
        %423 = vmatprep.subr.bf16.mxu0 0
        %424 = vmatpush2.bf16.msra.mxu0 0
        %425 = vmatprep.subr.bf16.mxu0 0
        %426 = vmatpush2.bf16.msra.mxu0 0
        %427 = vmatprep.subr.bf16.mxu0 0
        %428 = vmatpush2.bf16.msra.mxu0 0
        %429 = vmatprep.subr.bf16.mxu0 0
        %430 = vmatpush2.bf16.msra.mxu0 0
        %431 = vmatprep.mubr.bf16.mxu0 0
        %432 = vmatmul.mubr.bf16.gmra.mxu0 %v385
        %v433 = vpop.f32.mrf.mxu0
        %v434 = vadd.f32 0.0, %v433
        %v435 = vpop.f32.mrf.mxu0
        %v436 = vpop.f32.mrf.mxu0
        %v437 = vadd.f32 0.0, %v436
        %v438 = vpop.f32.mrf.mxu0
        %439 = vmatprep.mubr.bf16.mxu0 0
        %440 = vmatmul.mubr.bf16.gmra.mxu0 %v388
        %v441 = vpop.f32.mrf.mxu0
        %v442 = vadd.f32 0.0, %v441
        %v443 = vpop.f32.mrf.mxu0
        %v444 = vpop.f32.mrf.mxu0
        %v445 = vadd.f32 0.0, %v444
        %v446 = vpop.f32.mrf.mxu0
        %447 = vmatprep.mubr.bf16.mxu0 0
        %448 = vmatmul.mubr.bf16.gmra.mxu0 %v391
        %v449 = vpop.f32.mrf.mxu0
        %v450 = vadd.f32 0.0, %v449
        %v451 = vpop.f32.mrf.mxu0
        %v452 = vpop.f32.mrf.mxu0
        %v453 = vadd.f32 0.0, %v452
        %v454 = vpop.f32.mrf.mxu0
        %455 = vmatprep.mubr.bf16.mxu0 0
        %456 = vmatmul.mubr.bf16.gmra.mxu0 %v394
        %v457 = vpop.f32.mrf.mxu0
        %v458 = vadd.f32 0.0, %v457
        %v459 = vpop.f32.mrf.mxu0
        %v460 = vpop.f32.mrf.mxu0
        %v461 = vadd.f32 0.0, %v460
        %v462 = vpop.f32.mrf.mxu0
        %463 = vmatprep.mubr.bf16.mxu0 0
        %464 = vmatmul.mubr.bf16.gmra.mxu0 %v397
        %v465 = vpop.f32.mrf.mxu0
        %v466 = vadd.f32 0.0, %v465
        %v467 = vpop.f32.mrf.mxu0
        %v468 = vpop.f32.mrf.mxu0
        %v469 = vadd.f32 0.0, %v468
        %v470 = vpop.f32.mrf.mxu0
        %471 = vdwg.mxu0
        %472 = vxpose.xlu0.b32.start [1/16] %v434, 128
        %473 = vxpose.xlu0.b32.cont [2/16] %v437, 128
        %474 = vxpose.xlu0.b32.cont [3/16] 0.0, 128
        %475 = vxpose.xlu0.b32.cont [4/16] 0.0, 128
        %476 = vxpose.xlu0.b32.cont [5/16] 0.0, 128
        %477 = vxpose.xlu0.b32.cont [6/16] 0.0, 128
        %478 = vxpose.xlu0.b32.cont [7/16] 0.0, 128
        %479 = vxpose.xlu0.b32.cont [8/16] 0.0, 128
        %480 = vxpose.xlu0.b32.cont [9/16] 0.0, 128
        %481 = vxpose.xlu0.b32.cont [10/16] 0.0, 128
        %482 = vxpose.xlu0.b32.cont [11/16] 0.0, 128
        %483 = vxpose.xlu0.b32.cont [12/16] 0.0, 128
        %484 = vxpose.xlu0.b32.cont [13/16] 0.0, 128
        %485 = vxpose.xlu0.b32.cont [14/16] 0.0, 128
        %486 = vxpose.xlu0.b32.cont [15/16] 0.0, 128
        %487 = vxpose.xlu0.b32.end [16/16] 0.0, 128
        %v488 = vpop.trf.xlu0
        %v489 = vpop.trf.xlu0
        %v490 = vpop.trf.xlu0
        %v491 = vpop.trf.xlu0
        %v492 = vpop.trf.xlu0
        %v493 = vpop.trf.xlu0
        %v494 = vpop.trf.xlu0
        %v495 = vpop.trf.xlu0
        %v496 = vpop.trf.xlu0
        %v497 = vpop.trf.xlu0
        %v498 = vpop.trf.xlu0
        %v499 = vpop.trf.xlu0
        %v500 = vpop.trf.xlu0
        %v501 = vpop.trf.xlu0
        %v502 = vpop.trf.xlu0
        %v503 = vpop.trf.xlu0
        %504 = vxpose.xlu0.b32.start [1/16] %v442, 128
        %505 = vxpose.xlu0.b32.cont [2/16] %v445, 128
        %506 = vxpose.xlu0.b32.cont [3/16] 0.0, 128
        %507 = vxpose.xlu0.b32.cont [4/16] 0.0, 128
        %508 = vxpose.xlu0.b32.cont [5/16] 0.0, 128
        %509 = vxpose.xlu0.b32.cont [6/16] 0.0, 128
        %510 = vxpose.xlu0.b32.cont [7/16] 0.0, 128
        %511 = vxpose.xlu0.b32.cont [8/16] 0.0, 128
        %512 = vxpose.xlu0.b32.cont [9/16] 0.0, 128
        %513 = vxpose.xlu0.b32.cont [10/16] 0.0, 128
        %514 = vxpose.xlu0.b32.cont [11/16] 0.0, 128
        %515 = vxpose.xlu0.b32.cont [12/16] 0.0, 128
        %516 = vxpose.xlu0.b32.cont [13/16] 0.0, 128
        %517 = vxpose.xlu0.b32.cont [14/16] 0.0, 128
        %518 = vxpose.xlu0.b32.cont [15/16] 0.0, 128
        %519 = vxpose.xlu0.b32.end [16/16] 0.0, 128
        %v520 = vpop.trf.xlu0
        %v521 = vpop.trf.xlu0
        %v522 = vpop.trf.xlu0
        %v523 = vpop.trf.xlu0
        %v524 = vpop.trf.xlu0
        %v525 = vpop.trf.xlu0
        %v526 = vpop.trf.xlu0
        %v527 = vpop.trf.xlu0
        %v528 = vpop.trf.xlu0
        %v529 = vpop.trf.xlu0
        %v530 = vpop.trf.xlu0
        %v531 = vpop.trf.xlu0
        %v532 = vpop.trf.xlu0
        %v533 = vpop.trf.xlu0
        %v534 = vpop.trf.xlu0
        %v535 = vpop.trf.xlu0
        %536 = vxpose.xlu0.b32.start [1/16] %v450, 128
        %537 = vxpose.xlu0.b32.cont [2/16] %v453, 128
        %538 = vxpose.xlu0.b32.cont [3/16] 0.0, 128
        %539 = vxpose.xlu0.b32.cont [4/16] 0.0, 128
        %540 = vxpose.xlu0.b32.cont [5/16] 0.0, 128
        %541 = vxpose.xlu0.b32.cont [6/16] 0.0, 128
        %542 = vxpose.xlu0.b32.cont [7/16] 0.0, 128
        %543 = vxpose.xlu0.b32.cont [8/16] 0.0, 128
        %544 = vxpose.xlu0.b32.cont [9/16] 0.0, 128
        %545 = vxpose.xlu0.b32.cont [10/16] 0.0, 128
        %546 = vxpose.xlu0.b32.cont [11/16] 0.0, 128
        %547 = vxpose.xlu0.b32.cont [12/16] 0.0, 128
        %548 = vxpose.xlu0.b32.cont [13/16] 0.0, 128
        %549 = vxpose.xlu0.b32.cont [14/16] 0.0, 128
        %550 = vxpose.xlu0.b32.cont [15/16] 0.0, 128
        %551 = vxpose.xlu0.b32.end [16/16] 0.0, 128
        %v552 = vpop.trf.xlu0
        %v553 = vpop.trf.xlu0
        %v554 = vpop.trf.xlu0
        %v555 = vpop.trf.xlu0
        %v556 = vpop.trf.xlu0
        %v557 = vpop.trf.xlu0
        %v558 = vpop.trf.xlu0
        %v559 = vpop.trf.xlu0
        %v560 = vpop.trf.xlu0
        %v561 = vpop.trf.xlu0
        %v562 = vpop.trf.xlu0
        %v563 = vpop.trf.xlu0
        %v564 = vpop.trf.xlu0
        %v565 = vpop.trf.xlu0
        %v566 = vpop.trf.xlu0
        %v567 = vpop.trf.xlu0
        %568 = vxpose.xlu0.b32.start [1/16] %v458, 128
        %569 = vxpose.xlu0.b32.cont [2/16] %v461, 128
        %570 = vxpose.xlu0.b32.cont [3/16] 0.0, 128
        %571 = vxpose.xlu0.b32.cont [4/16] 0.0, 128
        %572 = vxpose.xlu0.b32.cont [5/16] 0.0, 128
        %573 = vxpose.xlu0.b32.cont [6/16] 0.0, 128
        %574 = vxpose.xlu0.b32.cont [7/16] 0.0, 128
        %575 = vxpose.xlu0.b32.cont [8/16] 0.0, 128
        %576 = vxpose.xlu0.b32.cont [9/16] 0.0, 128
        %577 = vxpose.xlu0.b32.cont [10/16] 0.0, 128
        %578 = vxpose.xlu0.b32.cont [11/16] 0.0, 128
        %579 = vxpose.xlu0.b32.cont [12/16] 0.0, 128
        %580 = vxpose.xlu0.b32.cont [13/16] 0.0, 128
        %581 = vxpose.xlu0.b32.cont [14/16] 0.0, 128
        %582 = vxpose.xlu0.b32.cont [15/16] 0.0, 128
        %583 = vxpose.xlu0.b32.end [16/16] 0.0, 128
        %v584 = vpop.trf.xlu0
        %v585 = vpop.trf.xlu0
        %v586 = vpop.trf.xlu0
        %v587 = vpop.trf.xlu0
        %v588 = vpop.trf.xlu0
        %v589 = vpop.trf.xlu0
        %v590 = vpop.trf.xlu0
        %v591 = vpop.trf.xlu0
        %v592 = vpop.trf.xlu0
        %v593 = vpop.trf.xlu0
        %v594 = vpop.trf.xlu0
        %v595 = vpop.trf.xlu0
        %v596 = vpop.trf.xlu0
        %v597 = vpop.trf.xlu0
        %v598 = vpop.trf.xlu0
        %v599 = vpop.trf.xlu0
        %600 = vxpose.xlu0.b32.start [1/16] %v466, 128
        %601 = vxpose.xlu0.b32.cont [2/16] %v469, 128
        %602 = vxpose.xlu0.b32.cont [3/16] 0.0, 128
        %603 = vxpose.xlu0.b32.cont [4/16] 0.0, 128
        %604 = vxpose.xlu0.b32.cont [5/16] 0.0, 128
        %605 = vxpose.xlu0.b32.cont [6/16] 0.0, 128
        %606 = vxpose.xlu0.b32.cont [7/16] 0.0, 128
        %607 = vxpose.xlu0.b32.cont [8/16] 0.0, 128
        %608 = vxpose.xlu0.b32.cont [9/16] 0.0, 128
        %609 = vxpose.xlu0.b32.cont [10/16] 0.0, 128
        %610 = vxpose.xlu0.b32.cont [11/16] 0.0, 128
        %611 = vxpose.xlu0.b32.cont [12/16] 0.0, 128
        %612 = vxpose.xlu0.b32.cont [13/16] 0.0, 128
        %613 = vxpose.xlu0.b32.cont [14/16] 0.0, 128
        %614 = vxpose.xlu0.b32.cont [15/16] 0.0, 128
        %615 = vxpose.xlu0.b32.end [16/16] 0.0, 128
        %v616 = vpop.trf.xlu0
        %v617 = vpop.trf.xlu0
        %v618 = vpop.trf.xlu0
        %v619 = vpop.trf.xlu0
        %v620 = vpop.trf.xlu0
        %v621 = vpop.trf.xlu0
        %v622 = vpop.trf.xlu0
        %v623 = vpop.trf.xlu0
        %v624 = vpop.trf.xlu0
        %v625 = vpop.trf.xlu0
        %v626 = vpop.trf.xlu0
        %v627 = vpop.trf.xlu0
        %v628 = vpop.trf.xlu0
        %v629 = vpop.trf.xlu0
        %v630 = vpop.trf.xlu0
        %v631 = vpop.trf.xlu0
        %v632 = vpack.c.bf16 %v489, %v488
        %v633 = vpack.c.bf16 %v521, %v520
        %v634 = vpack.c.bf16 %v553, %v552
        %v635 = vpack.c.bf16 %v585, %v584
        %v636 = vpack.c.bf16 %v617, %v616
        %v639 = vunpack.c.l.b16 %v330
        %v640 = vunpack.c.l.b16 %v331
        %v641 = vpack.c.b16 %v640, %v639
        %v644 = vsel %vm340, %v632, 0
        %v647 = vsel %vm340, %v633, 0
        %v650 = vsel %vm340, %v634, 0
        %v653 = vsel %vm340, %v635, 0
        %v656 = vsel %vm340, %v636, 0
        %658 = vmatprep.subr.bf16.mxu0 0
        %659 = vmatpush1.bf16.msra.mxu0 0
        %660 = vmatprep.subr.bf16.mxu0 0
        %661 = vmatpush1.bf16.msra.mxu0 0
        %662 = vmatprep.subr.bf16.mxu0 0
        %663 = vmatpush1.bf16.msra.mxu0 0
        %664 = vmatprep.subr.bf16.mxu0 0
        %665 = vmatpush1.bf16.msra.mxu0 0
        %666 = vmatprep.subr.bf16.mxu0 0
        %667 = vmatpush1.bf16.msra.mxu0 0
        %668 = vmatprep.subr.bf16.mxu0 0
        %669 = vmatpush1.bf16.msra.mxu0 0
        %670 = vmatprep.subr.bf16.mxu0 0
        %671 = vmatpush1.bf16.msra.mxu0 0
        %672 = vmatprep.subr.bf16.mxu0 0
        %673 = vmatpush1.bf16.msra.mxu0 %v641
        %674 = vmatprep.subr.bf16.mxu0 0
        %675 = vmatpush2.bf16.msra.mxu0 0
        %676 = vmatprep.subr.bf16.mxu0 0
        %677 = vmatpush2.bf16.msra.mxu0 0
        %678 = vmatprep.subr.bf16.mxu0 0
        %679 = vmatpush2.bf16.msra.mxu0 0
        %680 = vmatprep.subr.bf16.mxu0 0
        %681 = vmatpush2.bf16.msra.mxu0 0
        %682 = vmatprep.subr.bf16.mxu0 0
        %683 = vmatpush2.bf16.msra.mxu0 0
        %684 = vmatprep.subr.bf16.mxu0 0
        %685 = vmatpush2.bf16.msra.mxu0 0
        %686 = vmatprep.subr.bf16.mxu0 0
        %687 = vmatpush2.bf16.msra.mxu0 0
        %688 = vmatprep.subr.bf16.mxu0 0
        %689 = vmatpush2.bf16.msra.mxu0 0
        %690 = vmatprep.mubr.bf16.mxu0 0
        %691 = vmatmul.mubr.bf16.gmra.mxu0 %v644
        %v692 = vpop.f32.mrf.mxu0
        %v693 = vadd.f32 0.0, %v692
        %v694 = vpop.f32.mrf.mxu0
        %v695 = vpop.f32.mrf.mxu0
        %v696 = vadd.f32 0.0, %v695
        %v697 = vpop.f32.mrf.mxu0
        %698 = vmatprep.mubr.bf16.mxu0 0
        %699 = vmatmul.mubr.bf16.gmra.mxu0 %v647
        %v700 = vpop.f32.mrf.mxu0
        %v701 = vadd.f32 0.0, %v700
        %v702 = vpop.f32.mrf.mxu0
        %v703 = vpop.f32.mrf.mxu0
        %v704 = vadd.f32 0.0, %v703
        %v705 = vpop.f32.mrf.mxu0
        %706 = vmatprep.mubr.bf16.mxu0 0
        %707 = vmatmul.mubr.bf16.gmra.mxu0 %v650
        %v708 = vpop.f32.mrf.mxu0
        %v709 = vadd.f32 0.0, %v708
        %v710 = vpop.f32.mrf.mxu0
        %v711 = vpop.f32.mrf.mxu0
        %v712 = vadd.f32 0.0, %v711
        %v713 = vpop.f32.mrf.mxu0
        %714 = vmatprep.mubr.bf16.mxu0 0
        %715 = vmatmul.mubr.bf16.gmra.mxu0 %v653
        %v716 = vpop.f32.mrf.mxu0
        %v717 = vadd.f32 0.0, %v716
        %v718 = vpop.f32.mrf.mxu0
        %v719 = vpop.f32.mrf.mxu0
        %v720 = vadd.f32 0.0, %v719
        %v721 = vpop.f32.mrf.mxu0
        %722 = vmatprep.mubr.bf16.mxu0 0
        %723 = vmatmul.mubr.bf16.gmra.mxu0 %v656
        %v724 = vpop.f32.mrf.mxu0
        %v725 = vadd.f32 0.0, %v724
        %v726 = vpop.f32.mrf.mxu0
        %v727 = vpop.f32.mrf.mxu0
        %v728 = vadd.f32 0.0, %v727
        %v729 = vpop.f32.mrf.mxu0
        %730 = vdwg.mxu0
        %v731 = vmul.f32 %v693, %v693
        %v732 = vmul.f32 %v696, %v696
        %v733 = vmul.f32 %v701, %v701
        %v734 = vmul.f32 %v704, %v704
        %v735 = vmul.f32 %v693, %v701
        %v736 = vmul.f32 %v696, %v704
        %v737 = vsub.f32 %v709, %v731
        %v738 = vsub.f32 %v712, %v732
        %v739 = vsub.f32 %v717, %v733
        %v740 = vsub.f32 %v720, %v734
        %v741 = vsub.f32 %v725, %v735
        %v742 = vsub.f32 %v728, %v736
        %v743 = vmul.f32 %v735, 2.0
        %v744 = vmul.f32 %v736, 2.0
        %v745 = vadd.f32 %v743, 0.0001
        %v746 = vadd.f32 %v744, 0.0001
        %v747 = vmul.f32 %v741, 2.0
        %v748 = vmul.f32 %v742, 2.0
        %v749 = vadd.f32 %v747, 0.0009
        %v750 = vadd.f32 %v748, 0.0009
        %v751 = vmul.f32 %v745, %v749
        %v752 = vmul.f32 %v746, %v750
        %v753 = vadd.f32 %v731, %v733
        %v754 = vadd.f32 %v732, %v734
        %v755 = vadd.f32 %v753, 0.0001
        %v756 = vadd.f32 %v754, 0.0001
        %v757 = vadd.f32 %v737, %v739
        %v758 = vadd.f32 %v738, %v740
        %v759 = vadd.f32 %v757, 0.0009
        %v760 = vadd.f32 %v758, 0.0009
        %v761 = vmul.f32 %v755, %v759
        %v762 = vmul.f32 %v756, %v760
        %v763 = vrcp.pop %v761
        %v764 = vrcp.pop %v762
        %v765 = vmul.f32 %v751, %v763
        %v766 = vmul.f32 %v752, %v764
        %v767 = vsel %vm340, %v765, 0.0
        %v768 = vsel %vm340, %v766, 0.0
        %v769 = vadd.f32 %v767, %v768
        %770 = vadd.xlane.f32.xlu0 %v769
        %v771 = vpop.xlane.xlu0 %770
        %v772 = vrot.slane %v771, 4
        %v773 = vadd.f32 %v771, %v772
        %v774 = vrot.slane %v773, 2
        %v775 = vadd.f32 %v773, %v774
        %v776 = vrot.slane %v775, 1
        %v777 = vadd.f32 %v775, %v776
        %s778 = vtos %v777
        %v779 = vlaneseq
        %v780 = vshrl.u32 %v779, 7
        %v781 = vlaneseq
        %v782 = vand.u32 %v781, 127
        %vm783 = vcmp.eq.s32.totalorder %v782, 0
        %v784 = vstv %s352
        %v785 = vsel %vm783, %v784, 0.0
        %vm786 = vcmp.eq.s32.totalorder %v782, 1
        %v787 = vstv %s366
        %v788 = vsel %vm786, %v787, 0.0
        %v789 = vadd.f32 %v785, %v788
        %vm790 = vcmp.eq.s32.totalorder %v782, 2
        %v791 = vstv %s778
        %v792 = vsel %vm790, %v791, 0.0
        %v793 = vadd.f32 %v789, %v792
        %vm794 = vcmp.eq.s32.totalorder %v780, 0
        %v795 = vsel %vm794, %v793, 0.0
        %796 = vst [vmem:[%s322] sm:$0xff] %v795
        %p797 = scmp.lt.s32.totalorder %s22, 5
        %s798 = scalar_select %p797, %s22, 5
        %s799 = smul.addr %s798, 8
        %s800 = scalar_lea.vmem %s5, %s799
        // Predicated region
        $region53: #{l2_ssim_loss.1} parent=39 // pred_check
          %p801 = pneg %p160
        $region54: #{l2_ssim_loss.1} parent=39 // pred_check_branch
          %803 = sbr.rel (%p801) target = $region56
        $region55: #{l2_ssim_loss.1} parent=39 // pred_region
          _
        $region56: #{l2_ssim_loss.1} parent=39 // pred_fallthru
          _
      $region40: #{l2_ssim_loss.1} parent=5 // pred_fallthru
        _
      %p804 = scmp.le.s32.totalorder 2, %s17
      // Predicated region
      $region57: #{l2_ssim_loss.1} parent=5 // pred_check
        %p805 = pneg %p804
      $region58: #{l2_ssim_loss.1} parent=5 // pred_check_branch
        %807 = sbr.rel (%p805) target = $region60
      $region59: #{l2_ssim_loss.1} parent=5 // pred_region
        %s808 = ssub.s32 %s17, 2
        // Predicated region
        $region61: #{l2_ssim_loss.1} parent=59 // pred_check
          %p809 = pneg %p166
        $region62: #{l2_ssim_loss.1} parent=59 // pred_check_branch
          %811 = sbr.rel (%p809) target = $region64
        $region63: #{l2_ssim_loss.1} parent=59 // pred_region
          %p812 = scmp.lt.s32.totalorder %s23, 5
          %s813 = scalar_select %p812, %s23, 5
          %s814 = smul.addr %s813, 8
          %s815 = scalar_lea.vmem %s5, %s814
        $region64: #{l2_ssim_loss.1} parent=59 // pred_fallthru
          _
      $region60: #{l2_ssim_loss.1} parent=5 // pred_fallthru
        _
    $region6: #{l2_ssim_loss.1} parent=1 // loop_footer
      %s21 = sadd.s32 1, %s17
    $region7: #{l2_ssim_loss.1} parent=1 // loop_footer_branch
      %16 = sbr.rel target = $region3
    $region8: #{l2_ssim_loss.1} parent=1 // loop_exit
      _
    %816 = vsyncpa [#allocation3], 1
    %s817 = scalar_lea.sflag [#allocation3], 1
    %818 = vsyncpa %s817, 1
    %819 = vsyncpa [#allocation5], 1
    %s820 = scalar_lea.sflag [#allocation5], 1
    %821 = vsyncpa %s820, 1

</llo_original>
